<compile_context>
chip_gen: v7x
topology: tpu7x:2x2x1
jax: 0.10.0
libtpu: 0.0.40
codegen_flags: <defaults>
</compile_context>

<pallas_src>
import functools

import jax
import jax.numpy as jnp
from jax.experimental import pallas as pl
from jax.experimental.pallas import tpu as pltpu


def _round_up(n, m):
    return (n + m - 1) // m * m


def _fnn_fused_kernel(x_ref, *refs, num_layers: int):
    """Whole FNN on one batch tile, feature-major.

    x_ref: [TB, Din]            (native input dtype; cast to bf16 in-kernel)
    refs:  (w0, b0, w1, b1, ..., o_ref)
           w_l: [out_l, in_l]   bf16 (PyTorch orientation)
           b_l: [out_l, 1]      f32
    o_ref: [out_pad, TB]        f32, lane-dense along the batch tile
    """
    o_ref = refs[-1]
    wb = refs[:-1]

    # [TB, Din] -> [Din, TB]: XLU transpose (rides the otherwise-idle slot), then bf16 cast.
    h = x_ref[...].T.astype(jnp.bfloat16)

    for l in range(num_layers):                       # static Python loop -> unrolled trace
        w = wb[2 * l][...]                            # [out_l, in_l]  bf16
        b = wb[2 * l + 1][...]                        # [out_l, 1]     f32
        # MXU matmul with f32 accumulation; bias-add in f32 (v5e-safe epilogue).
        h = jnp.dot(w, h, preferred_element_type=jnp.float32) + b   # [out_l, TB] f32
        if l < num_layers - 1:
            # ReLU in f32, then drop to bf16 to halve live vreg bytes between layers.
            h = jnp.maximum(h, 0.0).astype(w.dtype)

    o_ref[...] = h.astype(o_ref.dtype)                # unmasked, lane-dense store


def init_fnn_params(key, layers, dtype=jnp.float32):
    """Xavier-uniform weights in math orientation (W [in, out] so y = x @ W + b), zero
    biases — numerically matches nn.init.xavier_uniform_ on PyTorch's [out, in] weight."""
    params = []
    for i in range(len(layers) - 1):
        fan_in, fan_out = layers[i], layers[i + 1]
        key, sub = jax.random.split(key)
        limit = jnp.sqrt(6.0 / (fan_in + fan_out))
        w = jax.random.uniform(
            sub, (fan_in, fan_out), minval=-limit, maxval=limit, dtype=dtype
        )
        b = jnp.zeros((fan_out,), dtype=dtype)
        params.append((w, b))
    return params


def prepare_fnn_params(params, *, use_bf16=True):
    """ONE-TIME packing of math params into kernel layout (do NOT call per forward pass).

    W [in, out] -> Wk [out_pad, in] (bf16), b [out] -> bk [out_pad, 1] (f32).
    Only the last layer's out dim is padded up to a multiple of 8; the padded rows hold
    zero weights/bias and are sliced off in fnn_forward.
    """
    wdtype = jnp.bfloat16 if use_bf16 else jnp.float32
    packed = []
    n = len(params)
    for l, (w, b) in enumerate(params):
        out = int(w.shape[1])
        out_p = _round_up(out, 8) if l == n - 1 else out
        wk = jnp.zeros((out_p, w.shape[0]), dtype=wdtype)
        wk = wk.at[:out, :].set(w.T.astype(wdtype))
        bk = jnp.zeros((out_p, 1), dtype=jnp.float32)
        bk = bk.at[:out, 0].set(b.reshape(-1).astype(jnp.float32))
        packed.append((wk, bk))
    return packed


def fnn_forward(x, packed_params, out_dim, *, batch_tile=1024):
    """Fused FNN forward.

    x:             [B, Din]  (native dtype, e.g. f32; cast to bf16 inside the kernel)
    packed_params: output of prepare_fnn_params
    out_dim:       logical output width of the last layer (before padding)
    Returns [B, out_dim] f32.
    """
    B, Din = x.shape
    num_layers = len(packed_params)
    out_pad = int(packed_params[-1][0].shape[0])
    out_dtype = jnp.float32

    # Lane-dense batch tile: multiple of 128; for small B still prefer a >=2-step grid so
    # both v7x TensorCores get work.  Ragged tails use Pallas boundary-block clipping.
    tb = max(128, min(_round_up(batch_tile, 128), _round_up(pl.cdiv(B, 2), 128)))
    num_tiles = pl.cdiv(B, tb)

    flat_inputs = [x]
    in_specs = [pl.BlockSpec((tb, Din), lambda i: (i, 0))]
    for wk, bk in packed_params:
        flat_inputs.append(wk)
        flat_inputs.append(bk)
        # Full-array blocks + constant index map -> params VMEM-resident across all tiles.
        in_specs.append(pl.BlockSpec(wk.shape, lambda i: (0, 0)))
        in_specs.append(pl.BlockSpec(bk.shape, lambda i: (0, 0)))

    # Roofline hints for XLA scheduling around the custom call.
    flops = 2 * B * sum(int(w.shape[0]) * int(w.shape[1]) for w, _ in packed_params)
    param_bytes = sum(
        int(a.size) * a.dtype.itemsize for wk, bk in packed_params for a in (wk, bk)
    )
    bytes_accessed = (
        B * Din * x.dtype.itemsize
        + param_bytes
        + out_pad * B * jnp.dtype(out_dtype).itemsize
    )

    # Only raise the scoped VMEM limit when the footprint actually needs it
    # (v5e default is 16 MiB; v7x physical VMEM is 64 MiB, so cap there).
    widest = max(int(Din), max(int(w.shape[0]) for w, _ in packed_params))
    vmem_need = (
        2 * tb * Din * x.dtype.itemsize      # double-buffered x tile
        + 2 * out_pad * tb * 4               # double-buffered out tile
        + 2 * param_bytes                    # params (worst case: 2 buffers each)
        + 4 * tb * widest * 4                # activation / spill slack
    )
    compiler_kwargs = dict(dimension_semantics=("parallel",))
    if vmem_need > 12 * 1024 * 1024:
        compiler_kwargs["vmem_limit_bytes"] = int(min(2 * vmem_need, 64 * 1024 * 1024))

    kernel = functools.partial(_fnn_fused_kernel, num_layers=num_layers)
    out_t = pl.pallas_call(
        kernel,
        out_shape=jax.ShapeDtypeStruct((out_pad, B), out_dtype),
        grid=(num_tiles,),
        in_specs=in_specs,
        out_specs=pl.BlockSpec((out_pad, tb), lambda i: (0, i)),
        compiler_params=pltpu.CompilerParams(**compiler_kwargs),
        cost_estimate=pl.CostEstimate(
            flops=flops, transcendentals=0, bytes_accessed=bytes_accessed
        ),
    )(*flat_inputs)

    # Tiny [out_pad, B] -> [B, out] layout fixup outside the kernel (negligible traffic);
    # disappears entirely once the downstream branch*trunk contraction is fused (TODO above).
    return out_t[:out_dim, :].T


def fnn_reference(x, params, *, use_bf16=True):
    """Pure-JAX reference with the SAME numerics as the kernel
    (bf16 MXU inputs, f32 accumulate, bf16 carry between layers)."""
    cdt = jnp.bfloat16 if use_bf16 else jnp.float32
    n = len(params)
    h = x.astype(cdt)
    for i, (w, b) in enumerate(params):
        h = jnp.dot(
            h, w.astype(cdt), preferred_element_type=jnp.float32
        ) + b.astype(jnp.float32)
        if i < n - 1:
            h = jnp.maximum(h, 0.0).astype(cdt)
    return h.astype(jnp.float32)


if __name__ == "__main__":
    key = jax.random.PRNGKey(0)
    k_x, k_p = jax.random.split(key)

    # Small shapes consistent with a deepONet branch/trunk FNN.
    layers = [16, 32, 32, 8]
    batch = 200  # not a multiple of the tile: exercises clipped boundary blocks

    x = jax.random.normal(k_x, (batch, layers[0]), dtype=jnp.float32)
    params = init_fnn_params(k_p, layers)               # math params (f32)
    packed = prepare_fnn_params(params, use_bf16=True)  # one-time kernel packing

    out = fnn_forward(x, packed, layers[-1], batch_tile=1024)
    out = jax.block_until_ready(out)
    assert out.shape == (batch, layers[-1])

    # Correctness vs a reference doing the identical math (bf16 inputs/carry, f32 accumulate).
    ref = fnn_reference(x, params, use_bf16=True)
    assert jnp.allclose(out, ref, atol=2e-3, rtol=2e-3), "mismatch vs matched JAX reference"

    # Informational only: distance to the pure-f32 reference (bf16 rounding).
    ref_f32 = fnn_reference(x, params, use_bf16=False)
    _max_diff_vs_f32 = float(jnp.max(jnp.abs(out - ref_f32)))

    print("KERNEL_OK")
</pallas_src>

<mosaic_0001>
module attributes {stable_mosaic.version = 11 : i64} {
  func.func @_fnn_fused_kernel(%arg0: i32, %arg1: memref<128x16xf32, #tpu.memory_space<vmem>>, %arg2: memref<32x16xbf16, #tpu.memory_space<vmem>>, %arg3: memref<32x1xf32, #tpu.memory_space<vmem>>, %arg4: memref<32x32xbf16, #tpu.memory_space<vmem>>, %arg5: memref<32x1xf32, #tpu.memory_space<vmem>>, %arg6: memref<8x32xbf16, #tpu.memory_space<vmem>>, %arg7: memref<8x1xf32, #tpu.memory_space<vmem>>, %arg8: memref<8x128xf32, #tpu.memory_space<vmem>>) attributes {dimension_semantics = [#tpu.dimension_semantics<parallel>], iteration_bounds = array<i64: 2>, scalar_prefetch = 0 : i64, scratch_operands = 0 : i64, tpu.core_type = #tpu.core_type<tc>, window_params = [{transform_indices = @transform_0, window_bounds = array<i64: 128, 16>}, {pipeline_mode = #tpu.pipeline_mode<synchronous>, transform_indices = @transform_1, window_bounds = array<i64: 32, 16>}, {pipeline_mode = #tpu.pipeline_mode<synchronous>, transform_indices = @transform_2, window_bounds = array<i64: 32, 1>}, {pipeline_mode = #tpu.pipeline_mode<synchronous>, transform_indices = @transform_3, window_bounds = array<i64: 32, 32>}, {pipeline_mode = #tpu.pipeline_mode<synchronous>, transform_indices = @transform_4, window_bounds = array<i64: 32, 1>}, {pipeline_mode = #tpu.pipeline_mode<synchronous>, transform_indices = @transform_5, window_bounds = array<i64: 8, 32>}, {pipeline_mode = #tpu.pipeline_mode<synchronous>, transform_indices = @transform_6, window_bounds = array<i64: 8, 1>}, {transform_indices = @transform_7, window_bounds = array<i64: 8, 128>}]} {
    %c0 = arith.constant 0 : index
    %c0_0 = arith.constant 0 : index
    %0 = vector.load %arg1[%c0, %c0_0] : memref<128x16xf32, #tpu.memory_space<vmem>>, vector<128x16xf32>
    %1 = tpu.transpose %0, [1, 0] : vector<128x16xf32> -> vector<16x128xf32>
    %2 = arith.truncf %1 : vector<16x128xf32> to vector<16x128xbf16>
    %c0_1 = arith.constant 0 : index
    %c0_2 = arith.constant 0 : index
    %3 = vector.load %arg2[%c0_1, %c0_2] : memref<32x16xbf16, #tpu.memory_space<vmem>>, vector<32x16xbf16>
    %c0_3 = arith.constant 0 : index
    %c0_4 = arith.constant 0 : index
    %4 = vector.load %arg3[%c0_3, %c0_4] : memref<32x1xf32, #tpu.memory_space<vmem>>, vector<32x1xf32>
    %cst = arith.constant dense<0.000000e+00> : vector<32x128xf32>
    %5 = tpu.matmul %3, %2, %cst {dimension_numbers = #tpu.dot_dimension_numbers<[1], [0], [0], [1], [0, 0, 1, 1], [], []>} : vector<32x16xbf16>, vector<16x128xbf16>, vector<32x128xf32> -> vector<32x128xf32>
    %6 = vector.broadcast %4 : vector<32x1xf32> to vector<32x128xf32>
    %7 = arith.addf %5, %6 : vector<32x128xf32>
    %cst_5 = arith.constant 0.000000e+00 : f32
    %8 = vector.broadcast %cst_5 : f32 to vector<32x128xf32>
    %9 = arith.maximumf %7, %8 : vector<32x128xf32>
    %10 = arith.truncf %9 : vector<32x128xf32> to vector<32x128xbf16>
    %c0_6 = arith.constant 0 : index
    %c0_7 = arith.constant 0 : index
    %11 = vector.load %arg4[%c0_6, %c0_7] : memref<32x32xbf16, #tpu.memory_space<vmem>>, vector<32x32xbf16>
    %c0_8 = arith.constant 0 : index
    %c0_9 = arith.constant 0 : index
    %12 = vector.load %arg5[%c0_8, %c0_9] : memref<32x1xf32, #tpu.memory_space<vmem>>, vector<32x1xf32>
    %cst_10 = arith.constant dense<0.000000e+00> : vector<32x128xf32>
    %13 = tpu.matmul %11, %10, %cst_10 {dimension_numbers = #tpu.dot_dimension_numbers<[1], [0], [0], [1], [0, 0, 1, 1], [], []>} : vector<32x32xbf16>, vector<32x128xbf16>, vector<32x128xf32> -> vector<32x128xf32>
    %14 = vector.broadcast %12 : vector<32x1xf32> to vector<32x128xf32>
    %15 = arith.addf %13, %14 : vector<32x128xf32>
    %cst_11 = arith.constant 0.000000e+00 : f32
    %16 = vector.broadcast %cst_11 : f32 to vector<32x128xf32>
    %17 = arith.maximumf %15, %16 : vector<32x128xf32>
    %18 = arith.truncf %17 : vector<32x128xf32> to vector<32x128xbf16>
    %c0_12 = arith.constant 0 : index
    %c0_13 = arith.constant 0 : index
    %19 = vector.load %arg6[%c0_12, %c0_13] : memref<8x32xbf16, #tpu.memory_space<vmem>>, vector<8x32xbf16>
    %c0_14 = arith.constant 0 : index
    %c0_15 = arith.constant 0 : index
    %20 = vector.load %arg7[%c0_14, %c0_15] : memref<8x1xf32, #tpu.memory_space<vmem>>, vector<8x1xf32>
    %cst_16 = arith.constant dense<0.000000e+00> : vector<8x128xf32>
    %21 = tpu.matmul %19, %18, %cst_16 {dimension_numbers = #tpu.dot_dimension_numbers<[1], [0], [0], [1], [0, 0, 1, 1], [], []>} : vector<8x32xbf16>, vector<32x128xbf16>, vector<8x128xf32> -> vector<8x128xf32>
    %22 = vector.broadcast %20 : vector<8x1xf32> to vector<8x128xf32>
    %23 = arith.addf %21, %22 : vector<8x128xf32>
    %c0_17 = arith.constant 0 : index
    %c0_18 = arith.constant 0 : index
    %24 = vector.load %arg8[%c0_17, %c0_18] : memref<8x128xf32, #tpu.memory_space<vmem>>, vector<8x128xf32>
    tpu.vector_store %arg8[%c0_17, %c0_18], %23 {strides = array<i32>} : memref<8x128xf32, #tpu.memory_space<vmem>>, vector<8x128xf32>,
    return
  }
  func.func @transform_0(%arg0: i32) -> (i32, i32) {
    %c0_i32 = arith.constant 0 : i32
    %c0_i32_0 = arith.constant 0 : i32
    return %arg0, %c0_i32 : i32, i32
  }
  func.func @transform_1(%arg0: i32) -> (i32, i32) {
    %c0_i32 = arith.constant 0 : i32
    %c0_i32_0 = arith.constant 0 : i32
    %c0_i32_1 = arith.constant 0 : i32
    return %c0_i32, %c0_i32_0 : i32, i32
  }
  func.func @transform_2(%arg0: i32) -> (i32, i32) {
    %c0_i32 = arith.constant 0 : i32
    %c0_i32_0 = arith.constant 0 : i32
    %c0_i32_1 = arith.constant 0 : i32
    return %c0_i32, %c0_i32_0 : i32, i32
  }
  func.func @transform_3(%arg0: i32) -> (i32, i32) {
    %c0_i32 = arith.constant 0 : i32
    %c0_i32_0 = arith.constant 0 : i32
    %c0_i32_1 = arith.constant 0 : i32
    return %c0_i32, %c0_i32_0 : i32, i32
  }
  func.func @transform_4(%arg0: i32) -> (i32, i32) {
    %c0_i32 = arith.constant 0 : i32
    %c0_i32_0 = arith.constant 0 : i32
    %c0_i32_1 = arith.constant 0 : i32
    return %c0_i32, %c0_i32_0 : i32, i32
  }
  func.func @transform_5(%arg0: i32) -> (i32, i32) {
    %c0_i32 = arith.constant 0 : i32
    %c0_i32_0 = arith.constant 0 : i32
    %c0_i32_1 = arith.constant 0 : i32
    return %c0_i32, %c0_i32_0 : i32, i32
  }
  func.func @transform_6(%arg0: i32) -> (i32, i32) {
    %c0_i32 = arith.constant 0 : i32
    %c0_i32_0 = arith.constant 0 : i32
    %c0_i32_1 = arith.constant 0 : i32
    return %c0_i32, %c0_i32_0 : i32, i32
  }
  func.func @transform_7(%arg0: i32) -> (i32, i32) {
    %c0_i32 = arith.constant 0 : i32
    %c0_i32_0 = arith.constant 0 : i32
    return %c0_i32, %arg0 : i32, i32
  }
}

</mosaic_0001>

<llo_original>
// kernel: tpu_custom_call.1
$region0: #{tpu_custom_call.1}
  #allocation0 [shape = 'u32[]', space=smem, size = 0x4, offset = 0x4, fixed_abs, tag = 'smem constant byte address 0x4 - core index']
  #allocation1 [shape = 'u32[144,128]{1,0:T(1,128)}', space=vmem, size = 0x12000, scoped, tag = 'internal scratch']
  %s0 = inlined_call_operand.vmem [shape: f32[200,16], index: 0, kind: input, shape index: {}]
  %s1 = inlined_call_operand.vmem [shape: bf16[32,16], index: 1, kind: input, shape index: {}]
  %s2 = inlined_call_operand.vmem [shape: f32[32,1], index: 2, kind: input, shape index: {}]
  %s3 = inlined_call_operand.vmem [shape: bf16[32,32], index: 3, kind: input, shape index: {}]
  %s4 = inlined_call_operand.vmem [shape: f32[32,1], index: 4, kind: input, shape index: {}]
  %s5 = inlined_call_operand.vmem [shape: bf16[8,32], index: 5, kind: input, shape index: {}]
  %s6 = inlined_call_operand.vmem [shape: f32[8,1], index: 6, kind: input, shape index: {}]
  %s7 = inlined_call_operand.hbm [shape: f32[8,200], index: 7, kind: output, shape index: {}]
  %s8 = sld [smem:[#allocation0]]
  $region61: #{tpu_custom_call.1} parent=0
    _
  %s10 = ssub.s32 1, %s8
  %s11 = scalar_select 0, %s10, %s8
  $region1: #{tpu_custom_call.1} parent=0
    #allocation2 [shape = 'u8[8192]{0}', space=vmem, size = 0x2000, scoped, tag = 'output window, operand 0']
    #allocation3 [shape = 's32[2]{0}', space=sflag, size = 0x8, scoped, tag = 'scoped memory for tpu_custom_call.1']
    %12 = vsyncpa [#allocation3], 0
    %s13 = scalar_lea.sflag [#allocation3], 1
    %14 = vsyncpa %s13, 0
    loop: start=0, step=1, limit=4
    $region2: #{tpu_custom_call.1} parent=1 // loop_pre_header
      _
    $region3: #{tpu_custom_call.1} parent=1 // loop_header
      %s16 = sphi 0, %s20
      %p17 = scmp.ge.s32.totalorder %s16, 4
      %s26 = sphi 0, %s28
      %s29 = sphi 0, %s26
      %s30 = sphi 0, %s29
      %s46 = sphi 0, %s30
      %s50 = sphi 0, %s50
      %s52 = sphi 0, %s50
      %s53 = sphi 0, %s52
      %s67 = sphi 0, %s53
      %s71 = sphi 0, %s71
      %s73 = sphi 0, %s71
      %s74 = sphi 0, %s73
      %s88 = sphi 0, %s74
      %s92 = sphi 0, %s92
      %s94 = sphi 0, %s92
      %s95 = sphi 0, %s94
      %s109 = sphi 0, %s95
      %s113 = sphi 0, %s113
      %s115 = sphi 0, %s113
      %s116 = sphi 0, %s115
      %s130 = sphi 0, %s116
      %s134 = sphi 0, %s134
      %s136 = sphi 0, %s134
      %s137 = sphi 0, %s136
      %s151 = sphi 0, %s137
      %s155 = sphi 0, %s155
      %s157 = sphi 0, %s155
      %s158 = sphi 0, %s157
      %s172 = sphi 0, %s158
      %s178 = sphi 0, %s180
      %s181 = sphi 0, %s178
      %s182 = sphi 0, %s181
      %s198 = sphi 0, %s182
    $region4: #{tpu_custom_call.1} parent=1 // loop_header_branch
      %19 = sbr.rel (%p17) target = $region8
    $region5: #{tpu_custom_call.1} parent=1 // loop_body
      %s21 = ssub.s32 %s16, 1
      %s22 = ssub.s32 %s16, 2
      %s23 = sadd.s32 %s16, 1
      %s24 = ssub.s32 %s16, %s23
      %p25 = scmp.eq.s32.totalorder %s24, 0
      %s27 = sadd.s32 %s26, 1
      %s28 = scalar_select %p25, %s26, %s27
      %p31 = pneg %p25
      %p32 = scmp.eq.s32.totalorder %s16, 1
      %p33 = por %p31, %p32
      %p34 = scmp.ne.s32.totalorder %s26, %s29
      %p35 = scmp.eq.s32.totalorder %s16, 0
      %p36 = por %p34, %p35
      %p37 = scmp.ne.s32.totalorder %s26, %s29
      %p38 = scmp.eq.s32.totalorder %s21, 1
      %p39 = por %p37, %p38
      %p40 = scmp.ne.s32.totalorder %s29, %s30
      %p41 = scmp.eq.s32.totalorder %s21, 0
      %p42 = por %p40, %p41
      %p43 = scmp.ne.s32.totalorder %s29, %s30
      %p44 = scmp.eq.s32.totalorder %s22, 1
      %p45 = por %p43, %p44
      %p47 = scmp.ne.s32.totalorder %s30, %s46
      %p48 = scmp.eq.s32.totalorder %s22, 0
      %p49 = por %p47, %p48
      %s51 = sadd.s32 %s50, 1
      %p54 = scmp.eq.s32.totalorder %s16, 1
      %p55 = scmp.ne.s32.totalorder %s50, %s52
      %p56 = scmp.eq.s32.totalorder %s16, 0
      %p57 = por %p55, %p56
      %p58 = scmp.ne.s32.totalorder %s50, %s52
      %p59 = scmp.eq.s32.totalorder %s21, 1
      %p60 = por %p58, %p59
      %p61 = scmp.ne.s32.totalorder %s52, %s53
      %p62 = scmp.eq.s32.totalorder %s21, 0
      %p63 = por %p61, %p62
      %p64 = scmp.ne.s32.totalorder %s52, %s53
      %p65 = scmp.eq.s32.totalorder %s22, 1
      %p66 = por %p64, %p65
      %p68 = scmp.ne.s32.totalorder %s53, %s67
      %p69 = scmp.eq.s32.totalorder %s22, 0
      %p70 = por %p68, %p69
      %s72 = sadd.s32 %s71, 1
      %p75 = scmp.eq.s32.totalorder %s16, 1
      %p76 = scmp.ne.s32.totalorder %s71, %s73
      %p77 = scmp.eq.s32.totalorder %s16, 0
      %p78 = por %p76, %p77
      %p79 = scmp.ne.s32.totalorder %s71, %s73
      %p80 = scmp.eq.s32.totalorder %s21, 1
      %p81 = por %p79, %p80
      %p82 = scmp.ne.s32.totalorder %s73, %s74
      %p83 = scmp.eq.s32.totalorder %s21, 0
      %p84 = por %p82, %p83
      %p85 = scmp.ne.s32.totalorder %s73, %s74
      %p86 = scmp.eq.s32.totalorder %s22, 1
      %p87 = por %p85, %p86
      %p89 = scmp.ne.s32.totalorder %s74, %s88
      %p90 = scmp.eq.s32.totalorder %s22, 0
      %p91 = por %p89, %p90
      %s93 = sadd.s32 %s92, 1
      %p96 = scmp.eq.s32.totalorder %s16, 1
      %p97 = scmp.ne.s32.totalorder %s92, %s94
      %p98 = scmp.eq.s32.totalorder %s16, 0
      %p99 = por %p97, %p98
      %p100 = scmp.ne.s32.totalorder %s92, %s94
      %p101 = scmp.eq.s32.totalorder %s21, 1
      %p102 = por %p100, %p101
      %p103 = scmp.ne.s32.totalorder %s94, %s95
      %p104 = scmp.eq.s32.totalorder %s21, 0
      %p105 = por %p103, %p104
      %p106 = scmp.ne.s32.totalorder %s94, %s95
      %p107 = scmp.eq.s32.totalorder %s22, 1
      %p108 = por %p106, %p107
      %p110 = scmp.ne.s32.totalorder %s95, %s109
      %p111 = scmp.eq.s32.totalorder %s22, 0
      %p112 = por %p110, %p111
      %s114 = sadd.s32 %s113, 1
      %p117 = scmp.eq.s32.totalorder %s16, 1
      %p118 = scmp.ne.s32.totalorder %s113, %s115
      %p119 = scmp.eq.s32.totalorder %s16, 0
      %p120 = por %p118, %p119
      %p121 = scmp.ne.s32.totalorder %s113, %s115
      %p122 = scmp.eq.s32.totalorder %s21, 1
      %p123 = por %p121, %p122
      %p124 = scmp.ne.s32.totalorder %s115, %s116
      %p125 = scmp.eq.s32.totalorder %s21, 0
      %p126 = por %p124, %p125
      %p127 = scmp.ne.s32.totalorder %s115, %s116
      %p128 = scmp.eq.s32.totalorder %s22, 1
      %p129 = por %p127, %p128
      %p131 = scmp.ne.s32.totalorder %s116, %s130
      %p132 = scmp.eq.s32.totalorder %s22, 0
      %p133 = por %p131, %p132
      %s135 = sadd.s32 %s134, 1
      %p138 = scmp.eq.s32.totalorder %s16, 1
      %p139 = scmp.ne.s32.totalorder %s134, %s136
      %p140 = scmp.eq.s32.totalorder %s16, 0
      %p141 = por %p139, %p140
      %p142 = scmp.ne.s32.totalorder %s134, %s136
      %p143 = scmp.eq.s32.totalorder %s21, 1
      %p144 = por %p142, %p143
      %p145 = scmp.ne.s32.totalorder %s136, %s137
      %p146 = scmp.eq.s32.totalorder %s21, 0
      %p147 = por %p145, %p146
      %p148 = scmp.ne.s32.totalorder %s136, %s137
      %p149 = scmp.eq.s32.totalorder %s22, 1
      %p150 = por %p148, %p149
      %p152 = scmp.ne.s32.totalorder %s137, %s151
      %p153 = scmp.eq.s32.totalorder %s22, 0
      %p154 = por %p152, %p153
      %s156 = sadd.s32 %s155, 1
      %p159 = scmp.eq.s32.totalorder %s16, 1
      %p160 = scmp.ne.s32.totalorder %s155, %s157
      %p161 = scmp.eq.s32.totalorder %s16, 0
      %p162 = por %p160, %p161
      %p163 = scmp.ne.s32.totalorder %s155, %s157
      %p164 = scmp.eq.s32.totalorder %s21, 1
      %p165 = por %p163, %p164
      %p166 = scmp.ne.s32.totalorder %s157, %s158
      %p167 = scmp.eq.s32.totalorder %s21, 0
      %p168 = por %p166, %p167
      %p169 = scmp.ne.s32.totalorder %s157, %s158
      %p170 = scmp.eq.s32.totalorder %s22, 1
      %p171 = por %p169, %p170
      %p173 = scmp.ne.s32.totalorder %s158, %s172
      %p174 = scmp.eq.s32.totalorder %s22, 0
      %p175 = por %p173, %p174
      %s176 = ssub.s32 %s16, %s23
      %p177 = scmp.eq.s32.totalorder %s176, 0
      %s179 = sadd.s32 %s178, 1
      %s180 = scalar_select %p177, %s178, %s179
      %p183 = pneg %p177
      %p184 = scmp.eq.s32.totalorder %s16, 1
      %p185 = por %p183, %p184
      %p186 = scmp.ne.s32.totalorder %s178, %s181
      %p187 = scmp.eq.s32.totalorder %s16, 0
      %p188 = por %p186, %p187
      %p189 = scmp.ne.s32.totalorder %s178, %s181
      %p190 = scmp.eq.s32.totalorder %s21, 1
      %p191 = por %p189, %p190
      %p192 = scmp.ne.s32.totalorder %s181, %s182
      %p193 = scmp.eq.s32.totalorder %s21, 0
      %p194 = por %p192, %p193
      %p195 = scmp.ne.s32.totalorder %s181, %s182
      %p196 = scmp.eq.s32.totalorder %s22, 1
      %p197 = por %p195, %p196
      %p199 = scmp.ne.s32.totalorder %s182, %s198
      %p200 = scmp.eq.s32.totalorder %s22, 0
      %p201 = por %p199, %p200
      %p202 = scmp.le.s32.totalorder 1, %s16
      %p203 = scmp.lt.s32.totalorder %s16, 3
      %p204 = pnand %p202, %p203
      %p205 = pneg %p204
      // Predicated region
      $region9: #{tpu_custom_call.1} parent=5 // pred_check
        _
      $region10: #{tpu_custom_call.1} parent=5 // pred_check_branch
        %207 = sbr.rel (%p204) target = $region12
      $region11: #{tpu_custom_call.1} parent=5 // pred_region
        %s208 = ssub.s32 %s16, 1
        // Predicated region
        $region13: #{tpu_custom_call.1} parent=11 // pred_check
          %p209 = pneg %p63
        $region14: #{tpu_custom_call.1} parent=11 // pred_check_branch
          %211 = sbr.rel (%p209) target = $region16
        $region15: #{tpu_custom_call.1} parent=11 // pred_region
          _
        $region16: #{tpu_custom_call.1} parent=11 // pred_fallthru
          _
        // Predicated region
        $region17: #{tpu_custom_call.1} parent=11 // pred_check
          %p212 = pneg %p84
        $region18: #{tpu_custom_call.1} parent=11 // pred_check_branch
          %214 = sbr.rel (%p212) target = $region20
        $region19: #{tpu_custom_call.1} parent=11 // pred_region
          _
        $region20: #{tpu_custom_call.1} parent=11 // pred_fallthru
          _
        // Predicated region
        $region21: #{tpu_custom_call.1} parent=11 // pred_check
          %p215 = pneg %p105
        $region22: #{tpu_custom_call.1} parent=11 // pred_check_branch
          %217 = sbr.rel (%p215) target = $region24
        $region23: #{tpu_custom_call.1} parent=11 // pred_region
          _
        $region24: #{tpu_custom_call.1} parent=11 // pred_fallthru
          _
        // Predicated region
        $region25: #{tpu_custom_call.1} parent=11 // pred_check
          %p218 = pneg %p126
        $region26: #{tpu_custom_call.1} parent=11 // pred_check_branch
          %220 = sbr.rel (%p218) target = $region28
        $region27: #{tpu_custom_call.1} parent=11 // pred_region
          _
        $region28: #{tpu_custom_call.1} parent=11 // pred_fallthru
          _
        // Predicated region
        $region29: #{tpu_custom_call.1} parent=11 // pred_check
          %p221 = pneg %p147
        $region30: #{tpu_custom_call.1} parent=11 // pred_check_branch
          %223 = sbr.rel (%p221) target = $region32
        $region31: #{tpu_custom_call.1} parent=11 // pred_region
          _
        $region32: #{tpu_custom_call.1} parent=11 // pred_fallthru
          _
        // Predicated region
        $region33: #{tpu_custom_call.1} parent=11 // pred_check
          %p224 = pneg %p168
        $region34: #{tpu_custom_call.1} parent=11 // pred_check_branch
          %226 = sbr.rel (%p224) target = $region36
        $region35: #{tpu_custom_call.1} parent=11 // pred_region
          _
        $region36: #{tpu_custom_call.1} parent=11 // pred_fallthru
          _
      $region12: #{tpu_custom_call.1} parent=5 // pred_fallthru
        _
      %p227 = scmp.lt.s32.totalorder %s16, 2
      // Predicated region
      $region37: #{tpu_custom_call.1} parent=5 // pred_check
        %p228 = pneg %p227
      $region38: #{tpu_custom_call.1} parent=5 // pred_check_branch
        %230 = sbr.rel (%p228) target = $region40
      $region39: #{tpu_custom_call.1} parent=5 // pred_region
        // Predicated region
        $region41: #{tpu_custom_call.1} parent=39 // pred_check
          %p231 = pneg %p36
        $region42: #{tpu_custom_call.1} parent=39 // pred_check_branch
          %233 = sbr.rel (%p231) target = $region44
        $region43: #{tpu_custom_call.1} parent=39 // pred_region
          %s234 = smul.u32 16, %s16
          %s235 = ssub.s32 25, %s234
          %p236 = scmp.lt.s32.totalorder %s235, 16
          %s237 = scalar_select %p236, %s235, 16
          %s238 = smul.u32 128, %s237
          %p239 = scmp.lt.s32.totalorder %s234, 24
          %s240 = scalar_select %p239, %s234, 24
          %s241 = smul.addr %s240, 8
          %s242 = scalar_lea.vmem %s0, %s241
          %s243 = smul.u32 16, %s16
          %s244 = ssub.s32 25, %s243
          %p245 = scmp.lt.s32.totalorder %s244, 16
          %s246 = scalar_select %p245, %s244, 16
          %s247 = smul.u32 128, %s246
        $region44: #{tpu_custom_call.1} parent=39 // pred_fallthru
          _
      $region40: #{tpu_custom_call.1} parent=5 // pred_fallthru
        _
      %p248 = scmp.le.s32.totalorder 1, %s16
      %p249 = scmp.lt.s32.totalorder %s16, 3
      %p250 = pnand %p248, %p249
      %p251 = pneg %p250
      // Predicated region
      $region45: #{tpu_custom_call.1} parent=5 // pred_check
        _
      $region46: #{tpu_custom_call.1} parent=5 // pred_check_branch
        %253 = sbr.rel (%p250) target = $region48
      $region47: #{tpu_custom_call.1} parent=5 // pred_region
        %s254 = ssub.s32 %s16, 1
        %s255 = smul.u32 16, %s21
        %s256 = ssub.s32 25, %s255
        %p257 = scmp.lt.s32.totalorder %s256, 16
        %s258 = scalar_select %p257, %s256, 16
        %s259 = smul.u32 128, %s258
        %p260 = scmp.lt.s32.totalorder %s255, 24
        %s261 = scalar_select %p260, %s255, 24
        %s262 = smul.addr %s261, 8
        %s263 = scalar_lea.vmem %s0, %s262
        %p264 = pneg %p42
        %p265 = pneg %p39
        %p266 = pneg %p63
        %p267 = pneg %p60
        %p268 = pneg %p84
        %p269 = pneg %p81
        %p270 = pneg %p105
        %p271 = pneg %p102
        %p272 = pneg %p126
        %p273 = pneg %p123
        %p274 = pneg %p147
        %p275 = pneg %p144
        %p276 = pneg %p168
        %p277 = pneg %p165
        %p278 = pneg %p194
        %p279 = pneg %p191
        %s280 = sand.u32 %s181, 1
        %s281 = scalar_lea.sflag [#allocation3], %s280
        %s282 = sand.u32 %s181, 1
        %s283 = smul.addr %s282, 8
        %s284 = scalar_lea.vmem [#allocation2], %s283
        %s285 = smul.u32 16, %s21
        %s286 = ssub.s32 25, %s285
        %p287 = scmp.lt.s32.totalorder %s286, 16
        %s288 = scalar_select %p287, %s286, 16
        %s289 = smul.u32 128, %s288
        %p290 = scmp.lt.s32.totalorder %s285, 24
        %s291 = scalar_select %p290, %s285, 24
        %s292 = smul.addr %s291, 8
        %s293 = scalar_lea.vmem %s0, %s292
        %s294 = smul.u32 16, %s21
        %s295 = ssub.s32 25, %s294
        %p296 = scmp.lt.s32.totalorder %s295, 16
        %s297 = scalar_select %p296, %s295, 16
        %s298 = smul.u32 128, %s297
        %v300 = vld [vmem:[%s293] sm:$0xff]
        %v301 = vld [vmem:[%s293 + $0x8] sm:$0xff]
        %v302 = vld [vmem:[%s293 + $0x10] sm:$0xff]
        %v303 = vld [vmem:[%s293 + $0x18] sm:$0xff]
        %v304 = vld [vmem:[%s293 + $0x20] sm:$0xff]
        %v305 = vld [vmem:[%s293 + $0x28] sm:$0xff]
        %v306 = vld [vmem:[%s293 + $0x30] sm:$0xff]
        %v307 = vld [vmem:[%s293 + $0x38] sm:$0xff]
        %v308 = vld [vmem:[%s293 + $0x40] sm:$0xff]
        %v309 = vld [vmem:[%s293 + $0x48] sm:$0xff]
        %v310 = vld [vmem:[%s293 + $0x50] sm:$0xff]
        %v311 = vld [vmem:[%s293 + $0x58] sm:$0xff]
        %v312 = vld [vmem:[%s293 + $0x60] sm:$0xff]
        %v313 = vld [vmem:[%s293 + $0x68] sm:$0xff]
        %v314 = vld [vmem:[%s293 + $0x70] sm:$0xff]
        %v315 = vld [vmem:[%s293 + $0x78] sm:$0xff]
        %316 = vxpose.xlu0.b32.start [1/16] %v300, 128
        %317 = vxpose.xlu0.b32.cont [2/16] %v301, 128
        %318 = vxpose.xlu0.b32.cont [3/16] %v302, 128
        %319 = vxpose.xlu0.b32.cont [4/16] %v303, 128
        %320 = vxpose.xlu0.b32.cont [5/16] %v304, 128
        %321 = vxpose.xlu0.b32.cont [6/16] %v305, 128
        %322 = vxpose.xlu0.b32.cont [7/16] %v306, 128
        %323 = vxpose.xlu0.b32.cont [8/16] %v307, 128
        %324 = vxpose.xlu0.b32.cont [9/16] %v308, 128
        %325 = vxpose.xlu0.b32.cont [10/16] %v309, 128
        %326 = vxpose.xlu0.b32.cont [11/16] %v310, 128
        %327 = vxpose.xlu0.b32.cont [12/16] %v311, 128
        %328 = vxpose.xlu0.b32.cont [13/16] %v312, 128
        %329 = vxpose.xlu0.b32.cont [14/16] %v313, 128
        %330 = vxpose.xlu0.b32.cont [15/16] %v314, 128
        %331 = vxpose.xlu0.b32.end [16/16] %v315, 128
        %v332 = vpop.trf.xlu0
        %v333 = vpop.trf.xlu0
        %v334 = vpop.trf.xlu0
        %v335 = vpop.trf.xlu0
        %v336 = vpop.trf.xlu0
        %v337 = vpop.trf.xlu0
        %v338 = vpop.trf.xlu0
        %v339 = vpop.trf.xlu0
        %v340 = vpop.trf.xlu0
        %v341 = vpop.trf.xlu0
        %v342 = vpop.trf.xlu0
        %v343 = vpop.trf.xlu0
        %v344 = vpop.trf.xlu0
        %v345 = vpop.trf.xlu0
        %v346 = vpop.trf.xlu0
        %v347 = vpop.trf.xlu0
        %v348 = vpack.c.bf16 %v333, %v332
        %v349 = vld [vmem:[%s1] sm:$0xf]
        %v350 = vld [vmem:[%s1 + $0x4] sm:$0xf]
        %v351 = vld [vmem:[%s1 + $0x8] sm:$0xf]
        %v352 = vld [vmem:[%s1 + $0xc] sm:$0xf]
        %v353 = vld [vmem:[%s2] sm:$0xff]
        %v354 = vld [vmem:[%s2 + $0x8] sm:$0xff]
        %v355 = vld [vmem:[%s2 + $0x10] sm:$0xff]
        %v356 = vld [vmem:[%s2 + $0x18] sm:$0xff]
        %358 = vset.pattern.permute.xlu0 0
        %359 = vperm.xlu0 %358, %v353
        %v360 = vpop.permute.xlu0 %359
        %363 = vset.pattern.permute.xlu0 0
        %364 = vperm.xlu0 %363, %v354
        %v365 = vpop.permute.xlu0 %364
        %368 = vset.pattern.permute.xlu0 0
        %369 = vperm.xlu0 %368, %v355
        %v370 = vpop.permute.xlu0 %369
        %373 = vset.pattern.permute.xlu0 0
        %374 = vperm.xlu0 %373, %v356
        %v375 = vpop.permute.xlu0 %374
        %v381 = vunpack.c.l.b16 %v349
        %v382 = vunpack.c.l.b16 %v350
        %v383 = vunpack.c.l.b16 %v351
        %v384 = vunpack.c.l.b16 %v352
        %v385 = vpack.c.b16 %v382, %v381
        %v386 = vpack.c.b16 %v384, %v383
        %vm387 = vcmask 130048
        %v389 = vsel %vm387, %v385, 0
        %v392 = vsel %vm387, %v386, 0
        %394 = vmatprep.subr.bf16.mxu0 0
        %395 = vmatpush1.bf16.msra.mxu0 %v348
        %396 = vmatprep.subr.bf16.mxu0 0
        %397 = vmatpush1.bf16.msra.mxu0 0
        %398 = vmatprep.subr.bf16.mxu0 0
        %399 = vmatpush1.bf16.msra.mxu0 0
        %400 = vmatprep.subr.bf16.mxu0 0
        %401 = vmatpush1.bf16.msra.mxu0 0
        %402 = vmatprep.subr.bf16.mxu0 0
        %403 = vmatpush1.bf16.msra.mxu0 0
        %404 = vmatprep.subr.bf16.mxu0 0
        %405 = vmatpush1.bf16.msra.mxu0 0
        %406 = vmatprep.subr.bf16.mxu0 0
        %407 = vmatpush1.bf16.msra.mxu0 0
        %408 = vmatprep.subr.bf16.mxu0 0
        %409 = vmatpush1.bf16.msra.mxu0 0
        %410 = vmatprep.subr.bf16.mxu0 0
        %411 = vmatpush1.bf16.msra.mxu0 0
        %412 = vmatprep.subr.bf16.mxu0 0
        %413 = vmatpush1.bf16.msra.mxu0 0
        %414 = vmatprep.subr.bf16.mxu0 0
        %415 = vmatpush1.bf16.msra.mxu0 0
        %416 = vmatprep.subr.bf16.mxu0 0
        %417 = vmatpush1.bf16.msra.mxu0 0
        %418 = vmatprep.subr.bf16.mxu0 0
        %419 = vmatpush1.bf16.msra.mxu0 0
        %420 = vmatprep.subr.bf16.mxu0 0
        %421 = vmatpush1.bf16.msra.mxu0 0
        %422 = vmatprep.subr.bf16.mxu0 0
        %423 = vmatpush1.bf16.msra.mxu0 0
        %424 = vmatprep.subr.bf16.mxu0 0
        %425 = vmatpush1.bf16.msra.mxu0 0
        %426 = vmatprep.mubr.bf16.mxu0 0
        %427 = vmatmul.mubr.bf16.gmra.mrb[0].mxu0 %v389
        %v428 = vpop.f32.mrb[0].mxu0
        %v429 = vadd.f32 %v360, %v428
        %v430 = vpop.f32.mrb[0].mxu0
        %v431 = vpop.f32.mrb[0].mxu0
        %v432 = vadd.f32 %v365, %v431
        %v433 = vpop.f32.mrb[0].mxu0
        %434 = vmatprep.mubr.bf16.mxu0 0
        %435 = vmatmul.mubr.bf16.gmra.mrb[0].mxu0 %v392
        %v436 = vpop.f32.mrb[0].mxu0
        %v437 = vadd.f32 %v370, %v436
        %v438 = vpop.f32.mrb[0].mxu0
        %v439 = vpop.f32.mrb[0].mxu0
        %v440 = vadd.f32 %v375, %v439
        %v441 = vpop.f32.mrb[0].mxu0
        %442 = vdwg.mxu0
        %v443 = vmax.f32 %v429, 0.0
        %v444 = vmax.f32 %v432, 0.0
        %v445 = vmax.f32 %v437, 0.0
        %v446 = vmax.f32 %v440, 0.0
        %v447 = vpack.c.bf16 %v444, %v443
        %v448 = vpack.c.bf16 %v446, %v445
        %v449 = vld [vmem:[%s3] sm:$0xf]
        %v450 = vld [vmem:[%s3 + $0x4] sm:$0xf]
        %v451 = vld [vmem:[%s3 + $0x8] sm:$0xf]
        %v452 = vld [vmem:[%s3 + $0xc] sm:$0xf]
        %v453 = vld [vmem:[%s4] sm:$0xff]
        %v454 = vld [vmem:[%s4 + $0x8] sm:$0xff]
        %v455 = vld [vmem:[%s4 + $0x10] sm:$0xff]
        %v456 = vld [vmem:[%s4 + $0x18] sm:$0xff]
        %458 = vset.pattern.permute.xlu0 0
        %459 = vperm.xlu0 %458, %v453
        %v460 = vpop.permute.xlu0 %459
        %463 = vset.pattern.permute.xlu0 0
        %464 = vperm.xlu0 %463, %v454
        %v465 = vpop.permute.xlu0 %464
        %468 = vset.pattern.permute.xlu0 0
        %469 = vperm.xlu0 %468, %v455
        %v470 = vpop.permute.xlu0 %469
        %473 = vset.pattern.permute.xlu0 0
        %474 = vperm.xlu0 %473, %v456
        %v475 = vpop.permute.xlu0 %474
        %v481 = vunpack.c.l.b16 %v449
        %v482 = vunpack.c.l.b16 %v450
        %v483 = vunpack.c.l.b16 %v451
        %v484 = vunpack.c.l.b16 %v452
        %v485 = vpack.c.b16 %v482, %v481
        %v486 = vpack.c.b16 %v484, %v483
        %vm487 = vcmask 261120
        %v489 = vsel %vm487, %v485, 0
        %v492 = vsel %vm487, %v486, 0
        %494 = vmatprep.subr.bf16.mxu0 0
        %495 = vmatpush1.bf16.msra.mxu0 %v447
        %496 = vmatprep.subr.bf16.mxu0 0
        %497 = vmatpush1.bf16.msra.mxu0 %v448
        %498 = vmatprep.subr.bf16.mxu0 0
        %499 = vmatpush1.bf16.msra.mxu0 0
        %500 = vmatprep.subr.bf16.mxu0 0
        %501 = vmatpush1.bf16.msra.mxu0 0
        %502 = vmatprep.subr.bf16.mxu0 0
        %503 = vmatpush1.bf16.msra.mxu0 0
        %504 = vmatprep.subr.bf16.mxu0 0
        %505 = vmatpush1.bf16.msra.mxu0 0
        %506 = vmatprep.subr.bf16.mxu0 0
        %507 = vmatpush1.bf16.msra.mxu0 0
        %508 = vmatprep.subr.bf16.mxu0 0
        %509 = vmatpush1.bf16.msra.mxu0 0
        %510 = vmatprep.subr.bf16.mxu0 0
        %511 = vmatpush1.bf16.msra.mxu0 0
        %512 = vmatprep.subr.bf16.mxu0 0
        %513 = vmatpush1.bf16.msra.mxu0 0
        %514 = vmatprep.subr.bf16.mxu0 0
        %515 = vmatpush1.bf16.msra.mxu0 0
        %516 = vmatprep.subr.bf16.mxu0 0
        %517 = vmatpush1.bf16.msra.mxu0 0
        %518 = vmatprep.subr.bf16.mxu0 0
        %519 = vmatpush1.bf16.msra.mxu0 0
        %520 = vmatprep.subr.bf16.mxu0 0
        %521 = vmatpush1.bf16.msra.mxu0 0
        %522 = vmatprep.subr.bf16.mxu0 0
        %523 = vmatpush1.bf16.msra.mxu0 0
        %524 = vmatprep.subr.bf16.mxu0 0
        %525 = vmatpush1.bf16.msra.mxu0 0
        %526 = vmatprep.mubr.bf16.mxu0 0
        %527 = vmatmul.mubr.bf16.gmra.mrb[0].mxu0 %v489
        %v528 = vpop.f32.mrb[0].mxu0
        %v529 = vadd.f32 %v460, %v528
        %v530 = vpop.f32.mrb[0].mxu0
        %v531 = vpop.f32.mrb[0].mxu0
        %v532 = vadd.f32 %v465, %v531
        %v533 = vpop.f32.mrb[0].mxu0
        %534 = vmatprep.mubr.bf16.mxu0 0
        %535 = vmatmul.mubr.bf16.gmra.mrb[0].mxu0 %v492
        %v536 = vpop.f32.mrb[0].mxu0
        %v537 = vadd.f32 %v470, %v536
        %v538 = vpop.f32.mrb[0].mxu0
        %v539 = vpop.f32.mrb[0].mxu0
        %v540 = vadd.f32 %v475, %v539
        %v541 = vpop.f32.mrb[0].mxu0
        %542 = vdwg.mxu0
        %v543 = vmax.f32 %v529, 0.0
        %v544 = vmax.f32 %v532, 0.0
        %v545 = vmax.f32 %v537, 0.0
        %v546 = vmax.f32 %v540, 0.0
        %v547 = vpack.c.bf16 %v544, %v543
        %v548 = vpack.c.bf16 %v546, %v545
        %v549 = vld [vmem:[%s5] sm:$0xf]
        %v550 = vld [vmem:[%s6] sm:$0xff]
        %552 = vset.pattern.permute.xlu0 0
        %553 = vperm.xlu0 %552, %v550
        %v554 = vpop.permute.xlu0 %553
        %v557 = vsel %vm487, %v549, 0
        %559 = vmatprep.subr.bf16.mxu0 0
        %560 = vmatpush1.bf16.msra.mxu0 %v547
        %561 = vmatprep.subr.bf16.mxu0 0
        %562 = vmatpush1.bf16.msra.mxu0 %v548
        %563 = vmatprep.subr.bf16.mxu0 0
        %564 = vmatpush1.bf16.msra.mxu0 0
        %565 = vmatprep.subr.bf16.mxu0 0
        %566 = vmatpush1.bf16.msra.mxu0 0
        %567 = vmatprep.subr.bf16.mxu0 0
        %568 = vmatpush1.bf16.msra.mxu0 0
        %569 = vmatprep.subr.bf16.mxu0 0
        %570 = vmatpush1.bf16.msra.mxu0 0
        %571 = vmatprep.subr.bf16.mxu0 0
        %572 = vmatpush1.bf16.msra.mxu0 0
        %573 = vmatprep.subr.bf16.mxu0 0
        %574 = vmatpush1.bf16.msra.mxu0 0
        %575 = vmatprep.subr.bf16.mxu0 0
        %576 = vmatpush1.bf16.msra.mxu0 0
        %577 = vmatprep.subr.bf16.mxu0 0
        %578 = vmatpush1.bf16.msra.mxu0 0
        %579 = vmatprep.subr.bf16.mxu0 0
        %580 = vmatpush1.bf16.msra.mxu0 0
        %581 = vmatprep.subr.bf16.mxu0 0
        %582 = vmatpush1.bf16.msra.mxu0 0
        %583 = vmatprep.subr.bf16.mxu0 0
        %584 = vmatpush1.bf16.msra.mxu0 0
        %585 = vmatprep.subr.bf16.mxu0 0
        %586 = vmatpush1.bf16.msra.mxu0 0
        %587 = vmatprep.subr.bf16.mxu0 0
        %588 = vmatpush1.bf16.msra.mxu0 0
        %589 = vmatprep.subr.bf16.mxu0 0
        %590 = vmatpush1.bf16.msra.mxu0 0
        %591 = vmatprep.mubr.bf16.mxu0 0
        %592 = vmatmul.mubr.bf16.gmra.mrb[0].mxu0 %v557
        %v593 = vpop.f32.mrb[0].mxu0
        %v594 = vadd.f32 %v554, %v593
        %v595 = vpop.f32.mrb[0].mxu0
        %v596 = vpop.f32.mrb[0].mxu0
        %v597 = vpop.f32.mrb[0].mxu0
        %598 = vdwg.mxu0
        %599 = vst [vmem:[%s284] sm:$0xff] %v594
        %s600 = sand.u32 %s181, 1
        %s601 = scalar_lea.sflag [#allocation3], %s600
        %s602 = sand.u32 %s181, 1
        %s603 = smul.addr %s602, 8
        %s604 = scalar_lea.vmem [#allocation2], %s603
        // Predicated region
        $region49: #{tpu_custom_call.1} parent=47 // pred_check
          %p605 = pneg %p191
        $region50: #{tpu_custom_call.1} parent=47 // pred_check_branch
          %607 = sbr.rel (%p605) target = $region52
        $region51: #{tpu_custom_call.1} parent=47 // pred_region
          %s609 = ssub.s32 128, 128
          %610 = vsyncadd %s601, %s609
          %s611 = smul.addr %s21, 128
          %s612 = scalar_lea.hbm %s7, %s611
          %s614 = sshll.u32 %s604, 4
          %s615 = int_to_ptr.vmem [resolvable:$true] %s614
          %617 = dma.vmem_to_hbm [thread:$0]  %s615, 128, %s612, %s601
        $region52: #{tpu_custom_call.1} parent=47 // pred_fallthru
          _
      $region48: #{tpu_custom_call.1} parent=5 // pred_fallthru
        _
      %p618 = scmp.le.s32.totalorder 2, %s16
      // Predicated region
      $region53: #{tpu_custom_call.1} parent=5 // pred_check
        %p619 = pneg %p618
      $region54: #{tpu_custom_call.1} parent=5 // pred_check_branch
        %621 = sbr.rel (%p619) target = $region56
      $region55: #{tpu_custom_call.1} parent=5 // pred_region
        %s622 = ssub.s32 %s16, 2
        // Predicated region
        $region57: #{tpu_custom_call.1} parent=55 // pred_check
          %p623 = pneg %p197
        $region58: #{tpu_custom_call.1} parent=55 // pred_check_branch
          %625 = sbr.rel (%p623) target = $region60
        $region59: #{tpu_custom_call.1} parent=55 // pred_region
          %s626 = sand.u32 %s182, 1
          %s627 = scalar_lea.sflag [#allocation3], %s626
          %s628 = sand.u32 %s182, 1
          %s629 = smul.addr %s628, 8
          %s630 = scalar_lea.vmem [#allocation2], %s629
          %631 = dma.done %s627, 128
        $region60: #{tpu_custom_call.1} parent=55 // pred_fallthru
          _
      $region56: #{tpu_custom_call.1} parent=5 // pred_fallthru
        _
    $region6: #{tpu_custom_call.1} parent=1 // loop_footer
      %s20 = sadd.s32 1, %s16
    $region7: #{tpu_custom_call.1} parent=1 // loop_footer_branch
      %15 = sbr.rel target = $region3
    $region8: #{tpu_custom_call.1} parent=1 // loop_exit
      _
    %632 = vsyncpa [#allocation3], 1
    %s633 = scalar_lea.sflag [#allocation3], 1
    %634 = vsyncpa %s633, 1

</llo_original>
